<compile_context>
chip_gen: v6e
topology: v6e:2x2x1
jax: 0.10.0
libtpu: 0.0.40
codegen_flags: <defaults>
</compile_context>

<pallas_src>
import math
from functools import partial

import jax
import jax.numpy as jnp
from jax.experimental import pallas as pl
from jax.experimental.pallas import tpu as pltpu

DEFAULT_COMPUTE_DTYPE = jnp.bfloat16  # production default (v5e/v6e/v7x MXU-native)


def _cross_attention_kernel(
    x_ref,      # (block_b*Tq, Din)      compute dtype
    enc_ref,    # (block_b*Tk, Din)      compute dtype
    wq_ref,     # (Din, Dqk)  pre-scaled by Dqk**-0.5, compute dtype
    bq_ref,     # (1, Dqk)    pre-scaled, f32
    wk_ref,     # (Din, Dqk)  compute dtype
    bk_ref,     # (1, Dqk)    f32
    wv_ref,     # (Din, Dv)   compute dtype
    bv_ref,     # (1, Dv)     f32
    wh_ref,     # (Dv, Dout)  compute dtype
    bh_ref,     # (1, Dout)   f32
    out_ref,    # (block_b*Tq, Dout) or lane-dense (block_b*Tq*Dout/128, 128)
    *, block_b, tq, tk,
):
    cd = x_ref.dtype  # compute dtype (bf16 in production, f32 in the strict self-test)

    x = x_ref[...]
    enc = enc_ref[...]

    # Projections on the MXU: compute-dtype operands, f32 accumulation + f32 bias.
    q = jnp.dot(x, wq_ref[...], preferred_element_type=jnp.float32) + bq_ref[...]
    k = jnp.dot(enc, wk_ref[...], preferred_element_type=jnp.float32) + bk_ref[...]
    v = jnp.dot(enc, wv_ref[...], preferred_element_type=jnp.float32) + bv_ref[...]

    d_qk = q.shape[-1]
    d_v = v.shape[-1]

    # Regroup flattened rows to (block_b, T, D); drop matmul operands back to the
    # compute dtype (accumulation stays f32 via preferred_element_type).
    q3 = q.reshape(block_b, tq, d_qk).astype(cd)
    k3 = k.reshape(block_b, tk, d_qk).astype(cd)
    v3 = v.reshape(block_b, tk, d_v).astype(cd)

    # Scores: contract the head dim of both operands (no materialized k.T).
    # Scale 1/sqrt(Dqk) is already folded into wq/bq.
    scores = jnp.einsum("bqd,bkd->bqk", q3, k3,
                        preferred_element_type=jnp.float32)

    # Numerically stable softmax over keys, exact division, all in f32.
    m = jnp.max(scores, axis=-1, keepdims=True)
    e = jnp.exp(scores - m)
    attn = e / jnp.sum(e, axis=-1, keepdims=True)

    # TODO(synk): nn.Dropout(p=0.1) on attn is treated as eval-mode identity;
    # training parity would need pltpu.prng_seed + pltpu.prng_random_bits masking.

    # Context + output projection; attn / h drop to compute dtype for the MXU.
    h = jnp.einsum("bqk,bkd->bqd", attn.astype(cd), v3,
                   preferred_element_type=jnp.float32)
    h2 = h.reshape(block_b * tq, d_v).astype(cd)
    out = jnp.dot(h2, wh_ref[...], preferred_element_type=jnp.float32) + bh_ref[...]

    # Store (lane-dense regroup when the wrapper chose a 128-wide output slab).
    out_ref[...] = out.reshape(out_ref.shape).astype(out_ref.dtype)


def prepare_params(params, *, compute_dtype=DEFAULT_COMPUTE_DTYPE):
    """One-time parameter prep (hoist out of the per-call path for inference loops):
    fold the 1/sqrt(Dqk) attention scale into the Q projection and cast matmul-operand
    weights to the compute dtype. Biases stay f32 (added to f32 MXU accumulators)."""
    wq, bq, wk, bk, wv, bv, wh, bh = params
    scale = wq.shape[1] ** -0.5
    cd = compute_dtype if compute_dtype is not None else wq.dtype
    f32 = jnp.float32
    return ((wq * scale).astype(cd), (bq * scale).astype(f32),
            wk.astype(cd), bk.astype(f32),
            wv.astype(cd), bv.astype(f32),
            wh.astype(cd), bh.astype(f32))


def _num_tensorcores():
    """Best-effort TensorCore count (v7x has 2 per chip); defaults to 1."""
    try:
        info = pltpu.get_tpu_info()
        for attr in ("num_cores", "core_count", "tensorcore_count"):
            n = getattr(info, attr, None)
            if n:
                return max(1, int(n))
    except Exception:
        pass
    return 1


def _pick_block_b(B, Tq, Tk, *, target_rows, sublane, min_blocks):
    """Largest divisor of B with block_b*Tq <= target_rows, keeping block rows a
    multiple of the sublane pack (or the block == full array) and, when possible,
    at least `min_blocks` grid steps (v7x: one per TensorCore)."""
    divisors = [d for d in range(1, B + 1) if B % d == 0]

    def aligned(d):
        return d == B or ((d * Tq) % sublane == 0 and (d * Tk) % sublane == 0)

    pool = [d for d in divisors if aligned(d) and (B // d) >= min_blocks]
    if not pool:
        pool = [d for d in divisors if aligned(d)]  # d == B always qualifies
    under = [d for d in pool if d * Tq <= target_rows]
    return max(under) if under else min(pool)


def cross_attention(x, encoder_output, params=None, *, prepared=None,
                    compute_dtype=DEFAULT_COMPUTE_DTYPE, block_b=None,
                    target_rows=512, min_blocks=None):
    """x: (B, Tq, Din); encoder_output: (B, Tk, Din) -> (B, Tq, Dout)."""
    B, Tq, Din = x.shape
    _, Tk, _ = encoder_output.shape

    if prepared is None:
        assert params is not None, "pass raw params or prepared params"
        prepared = prepare_params(params, compute_dtype=compute_dtype)
    wq, bq, wk, bk, wv, bv, wh, bh = prepared
    cd = wq.dtype
    Dqk, Dv, Dout = wq.shape[1], wv.shape[1], wh.shape[1]
    out_dtype = x.dtype

    # ---- tiling ---------------------------------------------------------------
    sublane = 8 * (4 // jnp.dtype(cd).itemsize)        # 8 for f32, 16 for bf16
    if min_blocks is None:
        min_blocks = _num_tensorcores()                 # v7x: keep both TCs busy
    if block_b is None:
        block_b = _pick_block_b(B, Tq, Tk, target_rows=target_rows,
                                sublane=sublane, min_blocks=min_blocks)
    assert B % block_b == 0, "block_b must divide B"
    n_blocks = B // block_b
    rows_q = block_b * Tq
    rows_k = block_b * Tk

    # Lane-dense output is feasible when the row-major regroup
    # (rows_q, Dout) -> (rows_q*Dout/128, 128) is exact and tile-aligned.
    lane_dense_ok = (
        Dout % 128 != 0
        and (rows_q * Dout) % 128 == 0
        and (((rows_q * Dout) // 128) % 8 == 0 or n_blocks == 1)
    )

    # ---- flatten activations & cast matmul operands ----------------------------
    x2 = x.reshape(B * Tq, Din).astype(cd)
    enc2 = encoder_output.reshape(B * Tk, Din).astype(cd)

    kernel = partial(_cross_attention_kernel, block_b=block_b, tq=Tq, tk=Tk)

    # ---- VMEM budget: explicit limit only when the scoped default would bind ---
    cb = jnp.dtype(cd).itemsize
    ob = jnp.dtype(out_dtype).itemsize
    est = (
        2 * (rows_q * Din + rows_k * Din) * cb           # double-buffered activations
        + 2 * rows_q * Dout * ob                         # double-buffered output
        + (Din * (2 * Dqk + Dv) + Dv * Dout) * cb        # weights (single-buffered)
        + (2 * Dqk + Dv + Dout) * 4                      # f32 biases
        + (rows_q * Dqk + rows_k * (Dqk + Dv)            # f32 intermediates
           + 2 * block_b * Tq * Tk + rows_q * (Dv + Dout)) * 4
    )
    vmem_limit = None
    if est > (12 << 20):
        # v7x: 64 MiB VMEM, 32 MiB scoped default — cap with headroom.
        vmem_limit = int(min(2 * est, 48 << 20))

    # TODO(synk): for long encoder sequences, add a Tk grid axis with an
    # online-softmax accumulator (flash-style) instead of one full encoder block.

    def run(lane_dense_out, single_buffer_weights):
        if lane_dense_out:
            out_block = ((rows_q * Dout) // 128, 128)
            out_shape = jax.ShapeDtypeStruct(((B * Tq * Dout) // 128, 128), out_dtype)
        else:
            out_block = (rows_q, Dout)
            out_shape = jax.ShapeDtypeStruct((B * Tq, Dout), out_dtype)

        wmode = {"pipeline_mode": pl.Buffered(1)} if single_buffer_weights else {}

        def wspec(shape):
            # Grid-invariant weights/biases: constant index_map (single-buffered
            # when supported, so they don't burn 2x VMEM on never-refetched blocks).
            return pl.BlockSpec(shape, lambda b: (0, 0), **wmode)

        grid_spec = pltpu.PrefetchScalarGridSpec(
            num_scalar_prefetch=0,
            grid=(n_blocks,),
            in_specs=[
                pl.BlockSpec((rows_q, Din), lambda b: (b, 0)),
                pl.BlockSpec((rows_k, Din), lambda b: (b, 0)),
                wspec((Din, Dqk)), wspec((1, Dqk)),
                wspec((Din, Dqk)), wspec((1, Dqk)),
                wspec((Din, Dv)), wspec((1, Dv)),
                wspec((Dv, Dout)), wspec((1, Dout)),
            ],
            out_specs=pl.BlockSpec(out_block, lambda b: (b, 0)),
        )
        return pl.pallas_call(
            kernel,
            out_shape=out_shape,
            grid_spec=grid_spec,
            compiler_params=pltpu.CompilerParams(
                dimension_semantics=("parallel",),
                vmem_limit_bytes=vmem_limit,
            ),
        )(x2, enc2, wq, bq, wk, bk, wv, bv, wh, bh)

    try:
        out2 = run(lane_dense_out=lane_dense_ok, single_buffer_weights=True)
    except Exception:
        # Conservative fallback (e.g. pl.Buffered(1) or the lane-dense regroup not
        # supported by this jax/libtpu build): default buffering, plain output block.
        out2 = run(lane_dense_out=False, single_buffer_weights=False)

    return out2.reshape(B, Tq, Dout)


def make_params(key, dec_dim_in, dim_proj_QK, dim_proj_V, dec_dim_out):
    """Deterministic synthetic params, PyTorch-Linear-style init, stored as (in, out)."""
    ks = jax.random.split(key, 8)

    def linear(kw, kb, fan_in, fan_out):
        bound = 1.0 / math.sqrt(fan_in)
        w = jax.random.uniform(kw, (fan_in, fan_out), jnp.float32, -bound, bound)
        b = jax.random.uniform(kb, (1, fan_out), jnp.float32, -bound, bound)
        return w, b

    wq, bq = linear(ks[0], ks[1], dec_dim_in, dim_proj_QK)
    wk, bk = linear(ks[2], ks[3], dec_dim_in, dim_proj_QK)
    wv, bv = linear(ks[4], ks[5], dec_dim_in, dim_proj_V)
    wh, bh = linear(ks[6], ks[7], dim_proj_V, dec_dim_out)
    return (wq, bq, wk, bk, wv, bv, wh, bh)


def cross_attention_ref(x, encoder_output, params):
    """Pure-JAX reference (dropout in eval mode = identity)."""
    wq, bq, wk, bk, wv, bv, wh, bh = params
    Q = x @ wq + bq
    K = encoder_output @ wk + bk
    V = encoder_output @ wv + bv
    scores = jnp.einsum("bqd,bkd->bqk", Q, K) * (K.shape[-1] ** -0.5)
    attn = jax.nn.softmax(scores, axis=-1)
    H = attn @ V
    return H @ wh + bh


if __name__ == "__main__":
    # Small shapes consistent with the module's forward.
    B = 2
    Tq = 8           # decoder sequence length
    Tk = 8           # encoder sequence length
    dec_dim_in = 32
    dim_proj_QK = 16
    dim_proj_V = 16
    dec_dim_out = 32

    key = jax.random.PRNGKey(0)
    kx, kenc, kp = jax.random.split(key, 3)
    x = jax.random.normal(kx, (B, Tq, dec_dim_in), jnp.float32)
    encoder_output = jax.random.normal(kenc, (B, Tk, dec_dim_in), jnp.float32)
    params = make_params(kp, dec_dim_in, dim_proj_QK, dim_proj_V, dec_dim_out)
    ref = cross_attention_ref(x, encoder_output, params)

    # Strict-parity path: f32 operands, exact softmax division -> tight tolerance.
    prepared_f32 = prepare_params(params, compute_dtype=jnp.float32)
    out_f32 = jax.block_until_ready(cross_attention(x, encoder_output, prepared=prepared_f32))
    assert out_f32.shape == (B, Tq, dec_dim_out)
    assert jnp.allclose(out_f32, ref, atol=1e-4, rtol=1e-4)

    # Production path: bf16 matmul operands (f32 accumulation + f32 softmax).
    prepared_bf16 = prepare_params(params, compute_dtype=jnp.bfloat16)
    out_bf16 = jax.block_until_ready(cross_attention(x, encoder_output, prepared=prepared_bf16))
    assert out_bf16.shape == (B, Tq, dec_dim_out)
    assert jnp.allclose(out_bf16, ref, atol=5e-2, rtol=5e-2)

    print("KERNEL_OK")
</pallas_src>

<mosaic_0001>
module attributes {stable_mosaic.version = 11 : i64} {
  func.func @_cross_attention_kernel(%arg0: i32, %arg1: memref<16x32xf32, #tpu.memory_space<vmem>>, %arg2: memref<16x32xf32, #tpu.memory_space<vmem>>, %arg3: memref<32x16xf32, #tpu.memory_space<vmem>>, %arg4: memref<1x16xf32, #tpu.memory_space<vmem>>, %arg5: memref<32x16xf32, #tpu.memory_space<vmem>>, %arg6: memref<1x16xf32, #tpu.memory_space<vmem>>, %arg7: memref<32x16xf32, #tpu.memory_space<vmem>>, %arg8: memref<1x16xf32, #tpu.memory_space<vmem>>, %arg9: memref<16x32xf32, #tpu.memory_space<vmem>>, %arg10: memref<1x32xf32, #tpu.memory_space<vmem>>, %arg11: memref<4x128xf32, #tpu.memory_space<vmem>>) attributes {dimension_semantics = [#tpu.dimension_semantics<parallel>], iteration_bounds = array<i64: 1>, scalar_prefetch = 0 : i64, scratch_operands = 0 : i64, tpu.core_type = #tpu.core_type<tc>, window_params = [{transform_indices = @transform_0, window_bounds = array<i64: 16, 32>}, {transform_indices = @transform_1, window_bounds = array<i64: 16, 32>}, {pipeline_mode = #tpu.pipeline_mode<synchronous>, transform_indices = @transform_2, window_bounds = array<i64: 32, 16>}, {pipeline_mode = #tpu.pipeline_mode<synchronous>, transform_indices = @transform_3, window_bounds = array<i64: 1, 16>}, {pipeline_mode = #tpu.pipeline_mode<synchronous>, transform_indices = @transform_4, window_bounds = array<i64: 32, 16>}, {pipeline_mode = #tpu.pipeline_mode<synchronous>, transform_indices = @transform_5, window_bounds = array<i64: 1, 16>}, {pipeline_mode = #tpu.pipeline_mode<synchronous>, transform_indices = @transform_6, window_bounds = array<i64: 32, 16>}, {pipeline_mode = #tpu.pipeline_mode<synchronous>, transform_indices = @transform_7, window_bounds = array<i64: 1, 16>}, {pipeline_mode = #tpu.pipeline_mode<synchronous>, transform_indices = @transform_8, window_bounds = array<i64: 16, 32>}, {pipeline_mode = #tpu.pipeline_mode<synchronous>, transform_indices = @transform_9, window_bounds = array<i64: 1, 32>}, {transform_indices = @transform_10, window_bounds = array<i64: 4, 128>}]} {
    %c0 = arith.constant 0 : index
    %c0_0 = arith.constant 0 : index
    %0 = vector.load %arg1[%c0, %c0_0] : memref<16x32xf32, #tpu.memory_space<vmem>>, vector<16x32xf32>
    %c0_1 = arith.constant 0 : index
    %c0_2 = arith.constant 0 : index
    %1 = vector.load %arg2[%c0_1, %c0_2] : memref<16x32xf32, #tpu.memory_space<vmem>>, vector<16x32xf32>
    %c0_3 = arith.constant 0 : index
    %c0_4 = arith.constant 0 : index
    %2 = vector.load %arg3[%c0_3, %c0_4] : memref<32x16xf32, #tpu.memory_space<vmem>>, vector<32x16xf32>
    %cst = arith.constant dense<0.000000e+00> : vector<16x16xf32>
    %3 = tpu.matmul %0, %2, %cst {dimension_numbers = #tpu.dot_dimension_numbers<[1], [0], [0], [1], [0, 0, 1, 1], [], []>} : vector<16x32xf32>, vector<32x16xf32>, vector<16x16xf32> -> vector<16x16xf32>
    %c0_5 = arith.constant 0 : index
    %c0_6 = arith.constant 0 : index
    %4 = vector.load %arg4[%c0_5, %c0_6] : memref<1x16xf32, #tpu.memory_space<vmem>>, vector<1x16xf32>
    %5 = vector.broadcast %4 : vector<1x16xf32> to vector<16x16xf32>
    %6 = arith.addf %3, %5 : vector<16x16xf32>
    %c0_7 = arith.constant 0 : index
    %c0_8 = arith.constant 0 : index
    %7 = vector.load %arg5[%c0_7, %c0_8] : memref<32x16xf32, #tpu.memory_space<vmem>>, vector<32x16xf32>
    %cst_9 = arith.constant dense<0.000000e+00> : vector<16x16xf32>
    %8 = tpu.matmul %1, %7, %cst_9 {dimension_numbers = #tpu.dot_dimension_numbers<[1], [0], [0], [1], [0, 0, 1, 1], [], []>} : vector<16x32xf32>, vector<32x16xf32>, vector<16x16xf32> -> vector<16x16xf32>
    %c0_10 = arith.constant 0 : index
    %c0_11 = arith.constant 0 : index
    %9 = vector.load %arg6[%c0_10, %c0_11] : memref<1x16xf32, #tpu.memory_space<vmem>>, vector<1x16xf32>
    %10 = vector.broadcast %9 : vector<1x16xf32> to vector<16x16xf32>
    %11 = arith.addf %8, %10 : vector<16x16xf32>
    %c0_12 = arith.constant 0 : index
    %c0_13 = arith.constant 0 : index
    %12 = vector.load %arg7[%c0_12, %c0_13] : memref<32x16xf32, #tpu.memory_space<vmem>>, vector<32x16xf32>
    %cst_14 = arith.constant dense<0.000000e+00> : vector<16x16xf32>
    %13 = tpu.matmul %1, %12, %cst_14 {dimension_numbers = #tpu.dot_dimension_numbers<[1], [0], [0], [1], [0, 0, 1, 1], [], []>} : vector<16x32xf32>, vector<32x16xf32>, vector<16x16xf32> -> vector<16x16xf32>
    %c0_15 = arith.constant 0 : index
    %c0_16 = arith.constant 0 : index
    %14 = vector.load %arg8[%c0_15, %c0_16] : memref<1x16xf32, #tpu.memory_space<vmem>>, vector<1x16xf32>
    %15 = vector.broadcast %14 : vector<1x16xf32> to vector<16x16xf32>
    %16 = arith.addf %13, %15 : vector<16x16xf32>
    %17 = vector.shape_cast %6 : vector<16x16xf32> to vector<2x8x16xf32>
    %18 = vector.shape_cast %11 : vector<16x16xf32> to vector<2x8x16xf32>
    %19 = vector.shape_cast %16 : vector<16x16xf32> to vector<2x8x16xf32>
    "tpu.trace_start"() <{level = 10 : i32, message = "bqd,bkd->bqk"}> : () -> ()
    %cst_17 = arith.constant dense<0.000000e+00> : vector<2x8x8xf32>
    %20 = tpu.matmul %17, %18, %cst_17 {dimension_numbers = #tpu.dot_dimension_numbers<[2], [2], [1], [1], [0, 0, 0, 1, 1, 1], [0], [0]>} : vector<2x8x16xf32>, vector<2x8x16xf32>, vector<2x8x8xf32> -> vector<2x8x8xf32>
    "tpu.trace_stop"() : () -> ()
    %cst_18 = arith.constant dense<0xFF800000> : vector<2x8xf32>
    %21 = vector.multi_reduction <maximumf>, %20, %cst_18 [2] : vector<2x8x8xf32> to vector<2x8xf32>
    %22 = vector.shape_cast %21 : vector<2x8xf32> to vector<2x8x1xf32>
    %23 = vector.broadcast %22 : vector<2x8x1xf32> to vector<2x8x8xf32>
    %24 = arith.subf %20, %23 : vector<2x8x8xf32>
    %25 = math.exp %24 : vector<2x8x8xf32>
    %cst_19 = arith.constant dense<0.000000e+00> : vector<2x8xf32>
    %26 = vector.multi_reduction <add>, %25, %cst_19 [2] : vector<2x8x8xf32> to vector<2x8xf32>
    %27 = vector.shape_cast %26 : vector<2x8xf32> to vector<2x8x1xf32>
    %28 = vector.broadcast %27 : vector<2x8x1xf32> to vector<2x8x8xf32>
    %29 = arith.divf %25, %28 : vector<2x8x8xf32>
    "tpu.trace_start"() <{level = 10 : i32, message = "bqk,bkd->bqd"}> : () -> ()
    %cst_20 = arith.constant dense<0.000000e+00> : vector<2x8x16xf32>
    %30 = tpu.matmul %29, %19, %cst_20 {dimension_numbers = #tpu.dot_dimension_numbers<[2], [1], [1], [2], [0, 0, 0, 1, 1, 2], [0], [0]>} : vector<2x8x8xf32>, vector<2x8x16xf32>, vector<2x8x16xf32> -> vector<2x8x16xf32>
    "tpu.trace_stop"() : () -> ()
    %31 = vector.shape_cast %30 : vector<2x8x16xf32> to vector<16x16xf32>
    %c0_21 = arith.constant 0 : index
    %c0_22 = arith.constant 0 : index
    %32 = vector.load %arg9[%c0_21, %c0_22] : memref<16x32xf32, #tpu.memory_space<vmem>>, vector<16x32xf32>
    %cst_23 = arith.constant dense<0.000000e+00> : vector<16x32xf32>
    %33 = tpu.matmul %31, %32, %cst_23 {dimension_numbers = #tpu.dot_dimension_numbers<[1], [0], [0], [1], [0, 0, 1, 1], [], []>} : vector<16x16xf32>, vector<16x32xf32>, vector<16x32xf32> -> vector<16x32xf32>
    %c0_24 = arith.constant 0 : index
    %c0_25 = arith.constant 0 : index
    %34 = vector.load %arg10[%c0_24, %c0_25] : memref<1x32xf32, #tpu.memory_space<vmem>>, vector<1x32xf32>
    %35 = vector.broadcast %34 : vector<1x32xf32> to vector<16x32xf32>
    %36 = arith.addf %33, %35 : vector<16x32xf32>
    %37 = vector.shape_cast %36 : vector<16x32xf32> to vector<4x128xf32>
    %c0_26 = arith.constant 0 : index
    %c0_27 = arith.constant 0 : index
    %38 = vector.load %arg11[%c0_26, %c0_27] : memref<4x128xf32, #tpu.memory_space<vmem>>, vector<4x128xf32>
    tpu.vector_store %arg11[%c0_26, %c0_27], %37 {strides = array<i32>} : memref<4x128xf32, #tpu.memory_space<vmem>>, vector<4x128xf32>,
    return
  }
  func.func @transform_0(%arg0: i32) -> (i32, i32) {
    %c0_i32 = arith.constant 0 : i32
    %c0_i32_0 = arith.constant 0 : i32
    return %arg0, %c0_i32 : i32, i32
  }
  func.func @transform_1(%arg0: i32) -> (i32, i32) {
    %c0_i32 = arith.constant 0 : i32
    %c0_i32_0 = arith.constant 0 : i32
    return %arg0, %c0_i32 : i32, i32
  }
  func.func @transform_2(%arg0: i32) -> (i32, i32) {
    %c0_i32 = arith.constant 0 : i32
    %c0_i32_0 = arith.constant 0 : i32
    %c0_i32_1 = arith.constant 0 : i32
    return %c0_i32, %c0_i32_0 : i32, i32
  }
  func.func @transform_3(%arg0: i32) -> (i32, i32) {
    %c0_i32 = arith.constant 0 : i32
    %c0_i32_0 = arith.constant 0 : i32
    %c0_i32_1 = arith.constant 0 : i32
    return %c0_i32, %c0_i32_0 : i32, i32
  }
  func.func @transform_4(%arg0: i32) -> (i32, i32) {
    %c0_i32 = arith.constant 0 : i32
    %c0_i32_0 = arith.constant 0 : i32
    %c0_i32_1 = arith.constant 0 : i32
    return %c0_i32, %c0_i32_0 : i32, i32
  }
  func.func @transform_5(%arg0: i32) -> (i32, i32) {
    %c0_i32 = arith.constant 0 : i32
    %c0_i32_0 = arith.constant 0 : i32
    %c0_i32_1 = arith.constant 0 : i32
    return %c0_i32, %c0_i32_0 : i32, i32
  }
  func.func @transform_6(%arg0: i32) -> (i32, i32) {
    %c0_i32 = arith.constant 0 : i32
    %c0_i32_0 = arith.constant 0 : i32
    %c0_i32_1 = arith.constant 0 : i32
    return %c0_i32, %c0_i32_0 : i32, i32
  }
  func.func @transform_7(%arg0: i32) -> (i32, i32) {
    %c0_i32 = arith.constant 0 : i32
    %c0_i32_0 = arith.constant 0 : i32
    %c0_i32_1 = arith.constant 0 : i32
    return %c0_i32, %c0_i32_0 : i32, i32
  }
  func.func @transform_8(%arg0: i32) -> (i32, i32) {
    %c0_i32 = arith.constant 0 : i32
    %c0_i32_0 = arith.constant 0 : i32
    %c0_i32_1 = arith.constant 0 : i32
    return %c0_i32, %c0_i32_0 : i32, i32
  }
  func.func @transform_9(%arg0: i32) -> (i32, i32) {
    %c0_i32 = arith.constant 0 : i32
    %c0_i32_0 = arith.constant 0 : i32
    %c0_i32_1 = arith.constant 0 : i32
    return %c0_i32, %c0_i32_0 : i32, i32
  }
  func.func @transform_10(%arg0: i32) -> (i32, i32) {
    %c0_i32 = arith.constant 0 : i32
    %c0_i32_0 = arith.constant 0 : i32
    return %arg0, %c0_i32 : i32, i32
  }
}

module attributes {stable_mosaic.version = 11 : i64} {
  func.func @_cross_attention_kernel(%arg0: i32, %arg1: memref<16x32xf32, #tpu.memory_space<vmem>>, %arg2: memref<16x32xf32, #tpu.memory_space<vmem>>, %arg3: memref<32x16xf32, #tpu.memory_space<vmem>>, %arg4: memref<1x16xf32, #tpu.memory_space<vmem>>, %arg5: memref<32x16xf32, #tpu.memory_space<vmem>>, %arg6: memref<1x16xf32, #tpu.memory_space<vmem>>, %arg7: memref<32x16xf32, #tpu.memory_space<vmem>>, %arg8: memref<1x16xf32, #tpu.memory_space<vmem>>, %arg9: memref<16x32xf32, #tpu.memory_space<vmem>>, %arg10: memref<1x32xf32, #tpu.memory_space<vmem>>, %arg11: memref<16x32xf32, #tpu.memory_space<vmem>>) attributes {dimension_semantics = [#tpu.dimension_semantics<parallel>], iteration_bounds = array<i64: 1>, scalar_prefetch = 0 : i64, scratch_operands = 0 : i64, tpu.core_type = #tpu.core_type<tc>, window_params = [{transform_indices = @transform_0, window_bounds = array<i64: 16, 32>}, {transform_indices = @transform_1, window_bounds = array<i64: 16, 32>}, {pipeline_mode = #tpu.pipeline_mode<synchronous>, transform_indices = @transform_2, window_bounds = array<i64: 32, 16>}, {pipeline_mode = #tpu.pipeline_mode<synchronous>, transform_indices = @transform_3, window_bounds = array<i64: 1, 16>}, {pipeline_mode = #tpu.pipeline_mode<synchronous>, transform_indices = @transform_4, window_bounds = array<i64: 32, 16>}, {pipeline_mode = #tpu.pipeline_mode<synchronous>, transform_indices = @transform_5, window_bounds = array<i64: 1, 16>}, {pipeline_mode = #tpu.pipeline_mode<synchronous>, transform_indices = @transform_6, window_bounds = array<i64: 32, 16>}, {pipeline_mode = #tpu.pipeline_mode<synchronous>, transform_indices = @transform_7, window_bounds = array<i64: 1, 16>}, {pipeline_mode = #tpu.pipeline_mode<synchronous>, transform_indices = @transform_8, window_bounds = array<i64: 16, 32>}, {pipeline_mode = #tpu.pipeline_mode<synchronous>, transform_indices = @transform_9, window_bounds = array<i64: 1, 32>}, {transform_indices = @transform_10, window_bounds = array<i64: 16, 32>}]} {
    %c0 = arith.constant 0 : index
    %c0_0 = arith.constant 0 : index
    %0 = vector.load %arg1[%c0, %c0_0] : memref<16x32xf32, #tpu.memory_space<vmem>>, vector<16x32xf32>
    %c0_1 = arith.constant 0 : index
    %c0_2 = arith.constant 0 : index
    %1 = vector.load %arg2[%c0_1, %c0_2] : memref<16x32xf32, #tpu.memory_space<vmem>>, vector<16x32xf32>
    %c0_3 = arith.constant 0 : index
    %c0_4 = arith.constant 0 : index
    %2 = vector.load %arg3[%c0_3, %c0_4] : memref<32x16xf32, #tpu.memory_space<vmem>>, vector<32x16xf32>
    %cst = arith.constant dense<0.000000e+00> : vector<16x16xf32>
    %3 = tpu.matmul %0, %2, %cst {dimension_numbers = #tpu.dot_dimension_numbers<[1], [0], [0], [1], [0, 0, 1, 1], [], []>} : vector<16x32xf32>, vector<32x16xf32>, vector<16x16xf32> -> vector<16x16xf32>
    %c0_5 = arith.constant 0 : index
    %c0_6 = arith.constant 0 : index
    %4 = vector.load %arg4[%c0_5, %c0_6] : memref<1x16xf32, #tpu.memory_space<vmem>>, vector<1x16xf32>
    %5 = vector.broadcast %4 : vector<1x16xf32> to vector<16x16xf32>
    %6 = arith.addf %3, %5 : vector<16x16xf32>
    %c0_7 = arith.constant 0 : index
    %c0_8 = arith.constant 0 : index
    %7 = vector.load %arg5[%c0_7, %c0_8] : memref<32x16xf32, #tpu.memory_space<vmem>>, vector<32x16xf32>
    %cst_9 = arith.constant dense<0.000000e+00> : vector<16x16xf32>
    %8 = tpu.matmul %1, %7, %cst_9 {dimension_numbers = #tpu.dot_dimension_numbers<[1], [0], [0], [1], [0, 0, 1, 1], [], []>} : vector<16x32xf32>, vector<32x16xf32>, vector<16x16xf32> -> vector<16x16xf32>
    %c0_10 = arith.constant 0 : index
    %c0_11 = arith.constant 0 : index
    %9 = vector.load %arg6[%c0_10, %c0_11] : memref<1x16xf32, #tpu.memory_space<vmem>>, vector<1x16xf32>
    %10 = vector.broadcast %9 : vector<1x16xf32> to vector<16x16xf32>
    %11 = arith.addf %8, %10 : vector<16x16xf32>
    %c0_12 = arith.constant 0 : index
    %c0_13 = arith.constant 0 : index
    %12 = vector.load %arg7[%c0_12, %c0_13] : memref<32x16xf32, #tpu.memory_space<vmem>>, vector<32x16xf32>
    %cst_14 = arith.constant dense<0.000000e+00> : vector<16x16xf32>
    %13 = tpu.matmul %1, %12, %cst_14 {dimension_numbers = #tpu.dot_dimension_numbers<[1], [0], [0], [1], [0, 0, 1, 1], [], []>} : vector<16x32xf32>, vector<32x16xf32>, vector<16x16xf32> -> vector<16x16xf32>
    %c0_15 = arith.constant 0 : index
    %c0_16 = arith.constant 0 : index
    %14 = vector.load %arg8[%c0_15, %c0_16] : memref<1x16xf32, #tpu.memory_space<vmem>>, vector<1x16xf32>
    %15 = vector.broadcast %14 : vector<1x16xf32> to vector<16x16xf32>
    %16 = arith.addf %13, %15 : vector<16x16xf32>
    %17 = vector.shape_cast %6 : vector<16x16xf32> to vector<2x8x16xf32>
    %18 = vector.shape_cast %11 : vector<16x16xf32> to vector<2x8x16xf32>
    %19 = vector.shape_cast %16 : vector<16x16xf32> to vector<2x8x16xf32>
    "tpu.trace_start"() <{level = 10 : i32, message = "bqd,bkd->bqk"}> : () -> ()
    %cst_17 = arith.constant dense<0.000000e+00> : vector<2x8x8xf32>
    %20 = tpu.matmul %17, %18, %cst_17 {dimension_numbers = #tpu.dot_dimension_numbers<[2], [2], [1], [1], [0, 0, 0, 1, 1, 1], [0], [0]>} : vector<2x8x16xf32>, vector<2x8x16xf32>, vector<2x8x8xf32> -> vector<2x8x8xf32>
    "tpu.trace_stop"() : () -> ()
    %cst_18 = arith.constant dense<0xFF800000> : vector<2x8xf32>
    %21 = vector.multi_reduction <maximumf>, %20, %cst_18 [2] : vector<2x8x8xf32> to vector<2x8xf32>
    %22 = vector.shape_cast %21 : vector<2x8xf32> to vector<2x8x1xf32>
    %23 = vector.broadcast %22 : vector<2x8x1xf32> to vector<2x8x8xf32>
    %24 = arith.subf %20, %23 : vector<2x8x8xf32>
    %25 = math.exp %24 : vector<2x8x8xf32>
    %cst_19 = arith.constant dense<0.000000e+00> : vector<2x8xf32>
    %26 = vector.multi_reduction <add>, %25, %cst_19 [2] : vector<2x8x8xf32> to vector<2x8xf32>
    %27 = vector.shape_cast %26 : vector<2x8xf32> to vector<2x8x1xf32>
    %28 = vector.broadcast %27 : vector<2x8x1xf32> to vector<2x8x8xf32>
    %29 = arith.divf %25, %28 : vector<2x8x8xf32>
    "tpu.trace_start"() <{level = 10 : i32, message = "bqk,bkd->bqd"}> : () -> ()
    %cst_20 = arith.constant dense<0.000000e+00> : vector<2x8x16xf32>
    %30 = tpu.matmul %29, %19, %cst_20 {dimension_numbers = #tpu.dot_dimension_numbers<[2], [1], [1], [2], [0, 0, 0, 1, 1, 2], [0], [0]>} : vector<2x8x8xf32>, vector<2x8x16xf32>, vector<2x8x16xf32> -> vector<2x8x16xf32>
    "tpu.trace_stop"() : () -> ()
    %31 = vector.shape_cast %30 : vector<2x8x16xf32> to vector<16x16xf32>
    %c0_21 = arith.constant 0 : index
    %c0_22 = arith.constant 0 : index
    %32 = vector.load %arg9[%c0_21, %c0_22] : memref<16x32xf32, #tpu.memory_space<vmem>>, vector<16x32xf32>
    %cst_23 = arith.constant dense<0.000000e+00> : vector<16x32xf32>
    %33 = tpu.matmul %31, %32, %cst_23 {dimension_numbers = #tpu.dot_dimension_numbers<[1], [0], [0], [1], [0, 0, 1, 1], [], []>} : vector<16x16xf32>, vector<16x32xf32>, vector<16x32xf32> -> vector<16x32xf32>
    %c0_24 = arith.constant 0 : index
    %c0_25 = arith.constant 0 : index
    %34 = vector.load %arg10[%c0_24, %c0_25] : memref<1x32xf32, #tpu.memory_space<vmem>>, vector<1x32xf32>
    %35 = vector.broadcast %34 : vector<1x32xf32> to vector<16x32xf32>
    %36 = arith.addf %33, %35 : vector<16x32xf32>
    %c0_26 = arith.constant 0 : index
    %c0_27 = arith.constant 0 : index
    %37 = vector.load %arg11[%c0_26, %c0_27] : memref<16x32xf32, #tpu.memory_space<vmem>>, vector<16x32xf32>
    tpu.vector_store %arg11[%c0_26, %c0_27], %36 {strides = array<i32>} : memref<16x32xf32, #tpu.memory_space<vmem>>, vector<16x32xf32>,
    return
  }
  func.func @transform_0(%arg0: i32) -> (i32, i32) {
    %c0_i32 = arith.constant 0 : i32
    %c0_i32_0 = arith.constant 0 : i32
    return %arg0, %c0_i32 : i32, i32
  }
  func.func @transform_1(%arg0: i32) -> (i32, i32) {
    %c0_i32 = arith.constant 0 : i32
    %c0_i32_0 = arith.constant 0 : i32
    return %arg0, %c0_i32 : i32, i32
  }
  func.func @transform_2(%arg0: i32) -> (i32, i32) {
    %c0_i32 = arith.constant 0 : i32
    %c0_i32_0 = arith.constant 0 : i32
    %c0_i32_1 = arith.constant 0 : i32
    return %c0_i32, %c0_i32_0 : i32, i32
  }
  func.func @transform_3(%arg0: i32) -> (i32, i32) {
    %c0_i32 = arith.constant 0 : i32
    %c0_i32_0 = arith.constant 0 : i32
    %c0_i32_1 = arith.constant 0 : i32
    return %c0_i32, %c0_i32_0 : i32, i32
  }
  func.func @transform_4(%arg0: i32) -> (i32, i32) {
    %c0_i32 = arith.constant 0 : i32
    %c0_i32_0 = arith.constant 0 : i32
    %c0_i32_1 = arith.constant 0 : i32
    return %c0_i32, %c0_i32_0 : i32, i32
  }
  func.func @transform_5(%arg0: i32) -> (i32, i32) {
    %c0_i32 = arith.constant 0 : i32
    %c0_i32_0 = arith.constant 0 : i32
    %c0_i32_1 = arith.constant 0 : i32
    return %c0_i32, %c0_i32_0 : i32, i32
  }
  func.func @transform_6(%arg0: i32) -> (i32, i32) {
    %c0_i32 = arith.constant 0 : i32
    %c0_i32_0 = arith.constant 0 : i32
    %c0_i32_1 = arith.constant 0 : i32
    return %c0_i32, %c0_i32_0 : i32, i32
  }
  func.func @transform_7(%arg0: i32) -> (i32, i32) {
    %c0_i32 = arith.constant 0 : i32
    %c0_i32_0 = arith.constant 0 : i32
    %c0_i32_1 = arith.constant 0 : i32
    return %c0_i32, %c0_i32_0 : i32, i32
  }
  func.func @transform_8(%arg0: i32) -> (i32, i32) {
    %c0_i32 = arith.constant 0 : i32
    %c0_i32_0 = arith.constant 0 : i32
    %c0_i32_1 = arith.constant 0 : i32
    return %c0_i32, %c0_i32_0 : i32, i32
  }
  func.func @transform_9(%arg0: i32) -> (i32, i32) {
    %c0_i32 = arith.constant 0 : i32
    %c0_i32_0 = arith.constant 0 : i32
    %c0_i32_1 = arith.constant 0 : i32
    return %c0_i32, %c0_i32_0 : i32, i32
  }
  func.func @transform_10(%arg0: i32) -> (i32, i32) {
    %c0_i32 = arith.constant 0 : i32
    %c0_i32_0 = arith.constant 0 : i32
    return %arg0, %c0_i32 : i32, i32
  }
}

</mosaic_0001>

<llo_original>
// kernel: tpu_custom_call.1
$region0: #{tpu_custom_call.1}
  #allocation0 [shape = 'u32[]', space=smem, size = 0x4, offset = 0x4, fixed_abs, tag = 'smem constant byte address 0x4 - core index']
  #allocation1 [shape = 'u32[144,128]{1,0:T(1,128)}', space=vmem, size = 0x12000, scoped, tag = 'internal scratch']
  %s0 = inlined_call_operand.vmem [shape: f32[16,32], index: 0, kind: input, shape index: {}]
  %s1 = inlined_call_operand.vmem [shape: f32[16,32], index: 1, kind: input, shape index: {}]
  %s2 = inlined_call_operand.vmem [shape: f32[32,16], index: 2, kind: input, shape index: {}]
  %s3 = inlined_call_operand.vmem [shape: f32[1,16], index: 3, kind: input, shape index: {}]
  %s4 = inlined_call_operand.vmem [shape: f32[32,16], index: 4, kind: input, shape index: {}]
  %s5 = inlined_call_operand.vmem [shape: f32[1,16], index: 5, kind: input, shape index: {}]
  %s6 = inlined_call_operand.vmem [shape: f32[32,16], index: 6, kind: input, shape index: {}]
  %s7 = inlined_call_operand.vmem [shape: f32[1,16], index: 7, kind: input, shape index: {}]
  %s8 = inlined_call_operand.vmem [shape: f32[16,32], index: 8, kind: input, shape index: {}]
  %s9 = inlined_call_operand.vmem [shape: f32[1,32], index: 9, kind: input, shape index: {}]
  %s10 = inlined_call_operand.hbm [shape: f32[16,32], index: 10, kind: output, shape index: {}]
  %s11 = sld [smem:[#allocation0]]
  $region50: #{tpu_custom_call.1} parent=0
    _
  %s13 = ssub.s32 1, %s11
  %s14 = scalar_select 0, %s13, %s11
  $region1: #{tpu_custom_call.1} parent=0
    #allocation2 [shape = 'u8[8192]{0}', space=vmem, size = 0x2000, scoped, tag = 'output window, operand 0, single buffered']
    #allocation3 [shape = 's32[1]{0}', space=sflag, size = 0x4, scoped, tag = 'scoped memory for tpu_custom_call.1']
    %15 = vsyncpa [#allocation3], 0
    // Predicated region
    $region2: #{tpu_custom_call.1} parent=1 // pred_check
      _
    $region3: #{tpu_custom_call.1} parent=1 // pred_check_branch
      %17 = sbr.rel (0) target = $region5
    $region4: #{tpu_custom_call.1} parent=1 // pred_region
      _
    $region5: #{tpu_custom_call.1} parent=1 // pred_fallthru
      _
    // Predicated region
    $region6: #{tpu_custom_call.1} parent=1 // pred_check
      _
    $region7: #{tpu_custom_call.1} parent=1 // pred_check_branch
      %19 = sbr.rel (0) target = $region9
    $region8: #{tpu_custom_call.1} parent=1 // pred_region
      _
    $region9: #{tpu_custom_call.1} parent=1 // pred_fallthru
      _
    // Predicated region
    $region10: #{tpu_custom_call.1} parent=1 // pred_check
      _
    $region11: #{tpu_custom_call.1} parent=1 // pred_check_branch
      %21 = sbr.rel (0) target = $region13
    $region12: #{tpu_custom_call.1} parent=1 // pred_region
      _
    $region13: #{tpu_custom_call.1} parent=1 // pred_fallthru
      _
    // Predicated region
    $region14: #{tpu_custom_call.1} parent=1 // pred_check
      _
    $region15: #{tpu_custom_call.1} parent=1 // pred_check_branch
      %23 = sbr.rel (0) target = $region17
    $region16: #{tpu_custom_call.1} parent=1 // pred_region
      _
    $region17: #{tpu_custom_call.1} parent=1 // pred_fallthru
      _
    // Predicated region
    $region18: #{tpu_custom_call.1} parent=1 // pred_check
      _
    $region19: #{tpu_custom_call.1} parent=1 // pred_check_branch
      %25 = sbr.rel (0) target = $region21
    $region20: #{tpu_custom_call.1} parent=1 // pred_region
      _
    $region21: #{tpu_custom_call.1} parent=1 // pred_fallthru
      _
    // Predicated region
    $region22: #{tpu_custom_call.1} parent=1 // pred_check
      _
    $region23: #{tpu_custom_call.1} parent=1 // pred_check_branch
      %27 = sbr.rel (0) target = $region25
    $region24: #{tpu_custom_call.1} parent=1 // pred_region
      _
    $region25: #{tpu_custom_call.1} parent=1 // pred_fallthru
      _
    // Predicated region
    $region26: #{tpu_custom_call.1} parent=1 // pred_check
      _
    $region27: #{tpu_custom_call.1} parent=1 // pred_check_branch
      %29 = sbr.rel (0) target = $region29
    $region28: #{tpu_custom_call.1} parent=1 // pred_region
      _
    $region29: #{tpu_custom_call.1} parent=1 // pred_fallthru
      _
    // Predicated region
    $region30: #{tpu_custom_call.1} parent=1 // pred_check
      _
    $region31: #{tpu_custom_call.1} parent=1 // pred_check_branch
      %31 = sbr.rel (0) target = $region33
    $region32: #{tpu_custom_call.1} parent=1 // pred_region
      _
    $region33: #{tpu_custom_call.1} parent=1 // pred_fallthru
      _
    // Predicated region
    $region34: #{tpu_custom_call.1} parent=1 // pred_check
      _
    $region35: #{tpu_custom_call.1} parent=1 // pred_check_branch
      %33 = sbr.rel (0) target = $region37
    $region36: #{tpu_custom_call.1} parent=1 // pred_region
      _
    $region37: #{tpu_custom_call.1} parent=1 // pred_fallthru
      _
    // Predicated region
    $region38: #{tpu_custom_call.1} parent=1 // pred_check
      _
    $region39: #{tpu_custom_call.1} parent=1 // pred_check_branch
      %35 = sbr.rel (0) target = $region41
    $region40: #{tpu_custom_call.1} parent=1 // pred_region
      _
    $region41: #{tpu_custom_call.1} parent=1 // pred_fallthru
      _
    %v36 = vld [vmem:[%s0] sm:$0xff]
    %v37 = vld [vmem:[%s0 + $0x8] sm:$0xff]
    %v38 = vld [vmem:[%s1] sm:$0xff]
    %v39 = vld [vmem:[%s1 + $0x8] sm:$0xff]
    %v40 = vld [vmem:[%s2] sm:$0xff]
    %v41 = vld [vmem:[%s2 + $0x8] sm:$0xff]
    %v42 = vld [vmem:[%s2 + $0x10] sm:$0xff]
    %v43 = vld [vmem:[%s2 + $0x18] sm:$0xff]
    %v44 = vld [vmem:[%s3] sm:$0x1]
    %v46 = vlaneseq
    %v47 = vshrl.u32 %v46, 7
    %v48 = vsub.s32 0, %v47
    %v49 = vrot.slane %v44, %v48
    %vm51 = vcmask 261120
    %v53 = vsel %vm51, %v36, 0
    %v56 = vsel %vm51, %v37, 0
    %58 = vmatprep.subr.mxu0 0.0
    %59 = vmatpush1.msra.mxu0 0.0
    %60 = vmatprep.subr.mxu0 0.0
    %61 = vmatpush1.msra.mxu0 0.0
    %62 = vmatprep.subr.mxu0 0.0
    %63 = vmatpush1.msra.mxu0 0.0
    %64 = vmatprep.subr.mxu0 0.0
    %65 = vmatpush1.msra.mxu0 0.0
    %66 = vmatprep.subr.mxu0 0.0
    %67 = vmatpush1.msra.mxu0 0.0
    %68 = vmatprep.subr.mxu0 0.0
    %69 = vmatpush1.msra.mxu0 0.0
    %70 = vmatprep.subr.mxu0 0.0
    %71 = vmatpush1.msra.mxu0 0.0
    %72 = vmatprep.subr.mxu0 0.0
    %73 = vmatpush1.msra.mxu0 0.0
    %74 = vmatprep.subr.mxu0 0.0
    %75 = vmatpush1.msra.mxu0 0.0
    %76 = vmatprep.subr.mxu0 0.0
    %77 = vmatpush1.msra.mxu0 0.0
    %78 = vmatprep.subr.mxu0 0.0
    %79 = vmatpush1.msra.mxu0 0.0
    %80 = vmatprep.subr.mxu0 0.0
    %81 = vmatpush1.msra.mxu0 0.0
    %82 = vmatprep.subr.mxu0 0.0
    %83 = vmatpush1.msra.mxu0 %v43
    %84 = vmatprep.subr.mxu0 0.0
    %85 = vmatpush1.msra.mxu0 %v42
    %86 = vmatprep.subr.mxu0 0.0
    %87 = vmatpush1.msra.mxu0 %v41
    %88 = vmatprep.subr.mxu0 0.0
    %89 = vmatpush1.msra.mxu0 %v40
    %90 = vmatprep.subr.mxu0 0.0
    %91 = vmatpush2.msra.mxu0 0.0
    %92 = vmatprep.subr.mxu0 0.0
    %93 = vmatpush2.msra.mxu0 0.0
    %94 = vmatprep.subr.mxu0 0.0
    %95 = vmatpush2.msra.mxu0 0.0
    %96 = vmatprep.subr.mxu0 0.0
    %97 = vmatpush2.msra.mxu0 0.0
    %98 = vmatprep.subr.mxu0 0.0
    %99 = vmatpush2.msra.mxu0 0.0
    %100 = vmatprep.subr.mxu0 0.0
    %101 = vmatpush2.msra.mxu0 0.0
    %102 = vmatprep.subr.mxu0 0.0
    %103 = vmatpush2.msra.mxu0 0.0
    %104 = vmatprep.subr.mxu0 0.0
    %105 = vmatpush2.msra.mxu0 0.0
    %106 = vmatprep.subr.mxu0 0.0
    %107 = vmatpush2.msra.mxu0 0.0
    %108 = vmatprep.subr.mxu0 0.0
    %109 = vmatpush2.msra.mxu0 0.0
    %110 = vmatprep.subr.mxu0 0.0
    %111 = vmatpush2.msra.mxu0 0.0
    %112 = vmatprep.subr.mxu0 0.0
    %113 = vmatpush2.msra.mxu0 0.0
    %114 = vmatprep.subr.mxu0 0.0
    %115 = vmatpush2.msra.mxu0 0.0
    %116 = vmatprep.subr.mxu0 0.0
    %117 = vmatpush2.msra.mxu0 0.0
    %118 = vmatprep.subr.mxu0 0.0
    %119 = vmatpush2.msra.mxu0 0.0
    %120 = vmatprep.subr.mxu0 0.0
    %121 = vmatpush2.msra.mxu0 0.0
    %122 = vmatprep.mubr.f32.mxu0 0.0
    %123 = vmatmul.mubr.f32.gmra.mxu0 %v53
    %v124 = vpop.f32.mrf.mxu0
    %v125 = vadd.f32 %v49, %v124
    %v126 = vpop.f32.mrf.mxu0
    %127 = vmatprep.mubr.f32.mxu0 0.0
    %128 = vmatmul.mubr.f32.gmra.mxu0 %v56
    %v129 = vpop.f32.mrf.mxu0
    %v130 = vadd.f32 %v49, %v129
    %v131 = vpop.f32.mrf.mxu0
    %132 = vdwg.mxu0
    %v133 = vld [vmem:[%s4] sm:$0xff]
    %v134 = vld [vmem:[%s4 + $0x8] sm:$0xff]
    %v135 = vld [vmem:[%s4 + $0x10] sm:$0xff]
    %v136 = vld [vmem:[%s4 + $0x18] sm:$0xff]
    %v137 = vld [vmem:[%s5] sm:$0x1]
    %v139 = vlaneseq
    %v140 = vshrl.u32 %v139, 7
    %v141 = vsub.s32 0, %v140
    %v142 = vrot.slane %v137, %v141
    %v145 = vsel %vm51, %v38, 0
    %v148 = vsel %vm51, %v39, 0
    %150 = vmatprep.subr.mxu0 0.0
    %151 = vmatpush1.msra.mxu0 0.0
    %152 = vmatprep.subr.mxu0 0.0
    %153 = vmatpush1.msra.mxu0 0.0
    %154 = vmatprep.subr.mxu0 0.0
    %155 = vmatpush1.msra.mxu0 0.0
    %156 = vmatprep.subr.mxu0 0.0
    %157 = vmatpush1.msra.mxu0 0.0
    %158 = vmatprep.subr.mxu0 0.0
    %159 = vmatpush1.msra.mxu0 0.0
    %160 = vmatprep.subr.mxu0 0.0
    %161 = vmatpush1.msra.mxu0 0.0
    %162 = vmatprep.subr.mxu0 0.0
    %163 = vmatpush1.msra.mxu0 0.0
    %164 = vmatprep.subr.mxu0 0.0
    %165 = vmatpush1.msra.mxu0 0.0
    %166 = vmatprep.subr.mxu0 0.0
    %167 = vmatpush1.msra.mxu0 0.0
    %168 = vmatprep.subr.mxu0 0.0
    %169 = vmatpush1.msra.mxu0 0.0
    %170 = vmatprep.subr.mxu0 0.0
    %171 = vmatpush1.msra.mxu0 0.0
    %172 = vmatprep.subr.mxu0 0.0
    %173 = vmatpush1.msra.mxu0 0.0
    %174 = vmatprep.subr.mxu0 0.0
    %175 = vmatpush1.msra.mxu0 %v136
    %176 = vmatprep.subr.mxu0 0.0
    %177 = vmatpush1.msra.mxu0 %v135
    %178 = vmatprep.subr.mxu0 0.0
    %179 = vmatpush1.msra.mxu0 %v134
    %180 = vmatprep.subr.mxu0 0.0
    %181 = vmatpush1.msra.mxu0 %v133
    %182 = vmatprep.subr.mxu0 0.0
    %183 = vmatpush2.msra.mxu0 0.0
    %184 = vmatprep.subr.mxu0 0.0
    %185 = vmatpush2.msra.mxu0 0.0
    %186 = vmatprep.subr.mxu0 0.0
    %187 = vmatpush2.msra.mxu0 0.0
    %188 = vmatprep.subr.mxu0 0.0
    %189 = vmatpush2.msra.mxu0 0.0
    %190 = vmatprep.subr.mxu0 0.0
    %191 = vmatpush2.msra.mxu0 0.0
    %192 = vmatprep.subr.mxu0 0.0
    %193 = vmatpush2.msra.mxu0 0.0
    %194 = vmatprep.subr.mxu0 0.0
    %195 = vmatpush2.msra.mxu0 0.0
    %196 = vmatprep.subr.mxu0 0.0
    %197 = vmatpush2.msra.mxu0 0.0
    %198 = vmatprep.subr.mxu0 0.0
    %199 = vmatpush2.msra.mxu0 0.0
    %200 = vmatprep.subr.mxu0 0.0
    %201 = vmatpush2.msra.mxu0 0.0
    %202 = vmatprep.subr.mxu0 0.0
    %203 = vmatpush2.msra.mxu0 0.0
    %204 = vmatprep.subr.mxu0 0.0
    %205 = vmatpush2.msra.mxu0 0.0
    %206 = vmatprep.subr.mxu0 0.0
    %207 = vmatpush2.msra.mxu0 0.0
    %208 = vmatprep.subr.mxu0 0.0
    %209 = vmatpush2.msra.mxu0 0.0
    %210 = vmatprep.subr.mxu0 0.0
    %211 = vmatpush2.msra.mxu0 0.0
    %212 = vmatprep.subr.mxu0 0.0
    %213 = vmatpush2.msra.mxu0 0.0
    %214 = vmatprep.mubr.f32.mxu0 0.0
    %215 = vmatmul.mubr.f32.gmra.mxu0 %v145
    %v216 = vpop.f32.mrf.mxu0
    %v217 = vadd.f32 %v142, %v216
    %v218 = vpop.f32.mrf.mxu0
    %219 = vmatprep.mubr.f32.mxu0 0.0
    %220 = vmatmul.mubr.f32.gmra.mxu0 %v148
    %v221 = vpop.f32.mrf.mxu0
    %v222 = vadd.f32 %v142, %v221
    %v223 = vpop.f32.mrf.mxu0
    %224 = vdwg.mxu0
    %v225 = vld [vmem:[%s6] sm:$0xff]
    %v226 = vld [vmem:[%s6 + $0x8] sm:$0xff]
    %v227 = vld [vmem:[%s6 + $0x10] sm:$0xff]
    %v228 = vld [vmem:[%s6 + $0x18] sm:$0xff]
    %v229 = vld [vmem:[%s7] sm:$0x1]
    %v231 = vlaneseq
    %v232 = vshrl.u32 %v231, 7
    %v233 = vsub.s32 0, %v232
    %v234 = vrot.slane %v229, %v233
    %236 = vmatprep.subr.mxu0 0.0
    %237 = vmatpush1.msra.mxu0 0.0
    %238 = vmatprep.subr.mxu0 0.0
    %239 = vmatpush1.msra.mxu0 0.0
    %240 = vmatprep.subr.mxu0 0.0
    %241 = vmatpush1.msra.mxu0 0.0
    %242 = vmatprep.subr.mxu0 0.0
    %243 = vmatpush1.msra.mxu0 0.0
    %244 = vmatprep.subr.mxu0 0.0
    %245 = vmatpush1.msra.mxu0 0.0
    %246 = vmatprep.subr.mxu0 0.0
    %247 = vmatpush1.msra.mxu0 0.0
    %248 = vmatprep.subr.mxu0 0.0
    %249 = vmatpush1.msra.mxu0 0.0
    %250 = vmatprep.subr.mxu0 0.0
    %251 = vmatpush1.msra.mxu0 0.0
    %252 = vmatprep.subr.mxu0 0.0
    %253 = vmatpush1.msra.mxu0 0.0
    %254 = vmatprep.subr.mxu0 0.0
    %255 = vmatpush1.msra.mxu0 0.0
    %256 = vmatprep.subr.mxu0 0.0
    %257 = vmatpush1.msra.mxu0 0.0
    %258 = vmatprep.subr.mxu0 0.0
    %259 = vmatpush1.msra.mxu0 0.0
    %260 = vmatprep.subr.mxu0 0.0
    %261 = vmatpush1.msra.mxu0 %v228
    %262 = vmatprep.subr.mxu0 0.0
    %263 = vmatpush1.msra.mxu0 %v227
    %264 = vmatprep.subr.mxu0 0.0
    %265 = vmatpush1.msra.mxu0 %v226
    %266 = vmatprep.subr.mxu0 0.0
    %267 = vmatpush1.msra.mxu0 %v225
    %268 = vmatprep.subr.mxu0 0.0
    %269 = vmatpush2.msra.mxu0 0.0
    %270 = vmatprep.subr.mxu0 0.0
    %271 = vmatpush2.msra.mxu0 0.0
    %272 = vmatprep.subr.mxu0 0.0
    %273 = vmatpush2.msra.mxu0 0.0
    %274 = vmatprep.subr.mxu0 0.0
    %275 = vmatpush2.msra.mxu0 0.0
    %276 = vmatprep.subr.mxu0 0.0
    %277 = vmatpush2.msra.mxu0 0.0
    %278 = vmatprep.subr.mxu0 0.0
    %279 = vmatpush2.msra.mxu0 0.0
    %280 = vmatprep.subr.mxu0 0.0
    %281 = vmatpush2.msra.mxu0 0.0
    %282 = vmatprep.subr.mxu0 0.0
    %283 = vmatpush2.msra.mxu0 0.0
    %284 = vmatprep.subr.mxu0 0.0
    %285 = vmatpush2.msra.mxu0 0.0
    %286 = vmatprep.subr.mxu0 0.0
    %287 = vmatpush2.msra.mxu0 0.0
    %288 = vmatprep.subr.mxu0 0.0
    %289 = vmatpush2.msra.mxu0 0.0
    %290 = vmatprep.subr.mxu0 0.0
    %291 = vmatpush2.msra.mxu0 0.0
    %292 = vmatprep.subr.mxu0 0.0
    %293 = vmatpush2.msra.mxu0 0.0
    %294 = vmatprep.subr.mxu0 0.0
    %295 = vmatpush2.msra.mxu0 0.0
    %296 = vmatprep.subr.mxu0 0.0
    %297 = vmatpush2.msra.mxu0 0.0
    %298 = vmatprep.subr.mxu0 0.0
    %299 = vmatpush2.msra.mxu0 0.0
    %300 = vmatprep.mubr.f32.mxu0 0.0
    %301 = vmatmul.mubr.f32.gmra.mxu0 %v145
    %v302 = vpop.f32.mrf.mxu0
    %v303 = vadd.f32 %v234, %v302
    %v304 = vpop.f32.mrf.mxu0
    %305 = vmatprep.mubr.f32.mxu0 0.0
    %306 = vmatmul.mubr.f32.gmra.mxu0 %v148
    %v307 = vpop.f32.mrf.mxu0
    %v308 = vadd.f32 %v234, %v307
    %v309 = vpop.f32.mrf.mxu0
    %310 = vdwg.mxu0
    %vm311 = vcmask 130048
    %v313 = vsel %vm311, %v125, 0
    %v316 = vsel %vm311, %v217, 0
    %318 = vmatprep.subr.mxu0 0.0
    %319 = vmatpush1.xpose.msra.mxu0 0.0
    %320 = vmatprep.subr.mxu0 0.0
    %321 = vmatpush1.xpose.msra.mxu0 0.0
    %322 = vmatprep.subr.mxu0 0.0
    %323 = vmatpush1.xpose.msra.mxu0 0.0
    %324 = vmatprep.subr.mxu0 0.0
    %325 = vmatpush1.xpose.msra.mxu0 0.0
    %326 = vmatprep.subr.mxu0 0.0
    %327 = vmatpush1.xpose.msra.mxu0 0.0
    %328 = vmatprep.subr.mxu0 0.0
    %329 = vmatpush1.xpose.msra.mxu0 0.0
    %330 = vmatprep.subr.mxu0 0.0
    %331 = vmatpush1.xpose.msra.mxu0 0.0
    %332 = vmatprep.subr.mxu0 0.0
    %333 = vmatpush1.xpose.msra.mxu0 0.0
    %334 = vmatprep.subr.mxu0 0.0
    %335 = vmatpush1.xpose.msra.mxu0 0.0
    %336 = vmatprep.subr.mxu0 0.0
    %337 = vmatpush1.xpose.msra.mxu0 0.0
    %338 = vmatprep.subr.mxu0 0.0
    %339 = vmatpush1.xpose.msra.mxu0 0.0
    %340 = vmatprep.subr.mxu0 0.0
    %341 = vmatpush1.xpose.msra.mxu0 0.0
    %342 = vmatprep.subr.mxu0 0.0
    %343 = vmatpush1.xpose.msra.mxu0 0.0
    %344 = vmatprep.subr.mxu0 0.0
    %345 = vmatpush1.xpose.msra.mxu0 0.0
    %346 = vmatprep.subr.mxu0 0.0
    %347 = vmatpush1.xpose.msra.mxu0 0.0
    %348 = vmatprep.subr.mxu0 0.0
    %349 = vmatpush1.xpose.msra.mxu0 %v316
    %350 = vmatprep.subr.mxu0 0.0
    %351 = vmatpush2.xpose.msra.mxu0 0.0
    %352 = vmatprep.subr.mxu0 0.0
    %353 = vmatpush2.xpose.msra.mxu0 0.0
    %354 = vmatprep.subr.mxu0 0.0
    %355 = vmatpush2.xpose.msra.mxu0 0.0
    %356 = vmatprep.subr.mxu0 0.0
    %357 = vmatpush2.xpose.msra.mxu0 0.0
    %358 = vmatprep.subr.mxu0 0.0
    %359 = vmatpush2.xpose.msra.mxu0 0.0
    %360 = vmatprep.subr.mxu0 0.0
    %361 = vmatpush2.xpose.msra.mxu0 0.0
    %362 = vmatprep.subr.mxu0 0.0
    %363 = vmatpush2.xpose.msra.mxu0 0.0
    %364 = vmatprep.subr.mxu0 0.0
    %365 = vmatpush2.xpose.msra.mxu0 0.0
    %366 = vmatprep.subr.mxu0 0.0
    %367 = vmatpush2.xpose.msra.mxu0 0.0
    %368 = vmatprep.subr.mxu0 0.0
    %369 = vmatpush2.xpose.msra.mxu0 0.0
    %370 = vmatprep.subr.mxu0 0.0
    %371 = vmatpush2.xpose.msra.mxu0 0.0
    %372 = vmatprep.subr.mxu0 0.0
    %373 = vmatpush2.xpose.msra.mxu0 0.0
    %374 = vmatprep.subr.mxu0 0.0
    %375 = vmatpush2.xpose.msra.mxu0 0.0
    %376 = vmatprep.subr.mxu0 0.0
    %377 = vmatpush2.xpose.msra.mxu0 0.0
    %378 = vmatprep.subr.mxu0 0.0
    %379 = vmatpush2.xpose.msra.mxu0 0.0
    %380 = vmatprep.subr.mxu0 0.0
    %381 = vmatpush2.xpose.msra.mxu0 0.0
    %382 = vmatprep.mubr.f32.mxu0 0.0
    %383 = vmatmul.mubr.f32.gmra.mxu0 %v313
    %v384 = vpop.f32.mrf.mxu0
    %v385 = vadd.f32 0.0, %v384
    %v386 = vpop.f32.mrf.mxu0
    %387 = vdwg.mxu0
    %v389 = vsel %vm311, %v130, 0
    %v392 = vsel %vm311, %v222, 0
    %394 = vmatprep.subr.mxu0 0.0
    %395 = vmatpush1.xpose.msra.mxu0 0.0
    %396 = vmatprep.subr.mxu0 0.0
    %397 = vmatpush1.xpose.msra.mxu0 0.0
    %398 = vmatprep.subr.mxu0 0.0
    %399 = vmatpush1.xpose.msra.mxu0 0.0
    %400 = vmatprep.subr.mxu0 0.0
    %401 = vmatpush1.xpose.msra.mxu0 0.0
    %402 = vmatprep.subr.mxu0 0.0
    %403 = vmatpush1.xpose.msra.mxu0 0.0
    %404 = vmatprep.subr.mxu0 0.0
    %405 = vmatpush1.xpose.msra.mxu0 0.0
    %406 = vmatprep.subr.mxu0 0.0
    %407 = vmatpush1.xpose.msra.mxu0 0.0
    %408 = vmatprep.subr.mxu0 0.0
    %409 = vmatpush1.xpose.msra.mxu0 0.0
    %410 = vmatprep.subr.mxu0 0.0
    %411 = vmatpush1.xpose.msra.mxu0 0.0
    %412 = vmatprep.subr.mxu0 0.0
    %413 = vmatpush1.xpose.msra.mxu0 0.0
    %414 = vmatprep.subr.mxu0 0.0
    %415 = vmatpush1.xpose.msra.mxu0 0.0
    %416 = vmatprep.subr.mxu0 0.0
    %417 = vmatpush1.xpose.msra.mxu0 0.0
    %418 = vmatprep.subr.mxu0 0.0
    %419 = vmatpush1.xpose.msra.mxu0 0.0
    %420 = vmatprep.subr.mxu0 0.0
    %421 = vmatpush1.xpose.msra.mxu0 0.0
    %422 = vmatprep.subr.mxu0 0.0
    %423 = vmatpush1.xpose.msra.mxu0 0.0
    %424 = vmatprep.subr.mxu0 0.0
    %425 = vmatpush1.xpose.msra.mxu0 %v392
    %426 = vmatprep.subr.mxu0 0.0
    %427 = vmatpush2.xpose.msra.mxu0 0.0
    %428 = vmatprep.subr.mxu0 0.0
    %429 = vmatpush2.xpose.msra.mxu0 0.0
    %430 = vmatprep.subr.mxu0 0.0
    %431 = vmatpush2.xpose.msra.mxu0 0.0
    %432 = vmatprep.subr.mxu0 0.0
    %433 = vmatpush2.xpose.msra.mxu0 0.0
    %434 = vmatprep.subr.mxu0 0.0
    %435 = vmatpush2.xpose.msra.mxu0 0.0
    %436 = vmatprep.subr.mxu0 0.0
    %437 = vmatpush2.xpose.msra.mxu0 0.0
    %438 = vmatprep.subr.mxu0 0.0
    %439 = vmatpush2.xpose.msra.mxu0 0.0
    %440 = vmatprep.subr.mxu0 0.0
    %441 = vmatpush2.xpose.msra.mxu0 0.0
    %442 = vmatprep.subr.mxu0 0.0
    %443 = vmatpush2.xpose.msra.mxu0 0.0
    %444 = vmatprep.subr.mxu0 0.0
    %445 = vmatpush2.xpose.msra.mxu0 0.0
    %446 = vmatprep.subr.mxu0 0.0
    %447 = vmatpush2.xpose.msra.mxu0 0.0
    %448 = vmatprep.subr.mxu0 0.0
    %449 = vmatpush2.xpose.msra.mxu0 0.0
    %450 = vmatprep.subr.mxu0 0.0
    %451 = vmatpush2.xpose.msra.mxu0 0.0
    %452 = vmatprep.subr.mxu0 0.0
    %453 = vmatpush2.xpose.msra.mxu0 0.0
    %454 = vmatprep.subr.mxu0 0.0
    %455 = vmatpush2.xpose.msra.mxu0 0.0
    %456 = vmatprep.subr.mxu0 0.0
    %457 = vmatpush2.xpose.msra.mxu0 0.0
    %458 = vmatprep.mubr.f32.mxu0 0.0
    %459 = vmatmul.mubr.f32.gmra.mxu0 %v389
    %v460 = vpop.f32.mrf.mxu0
    %v461 = vadd.f32 0.0, %v460
    %v462 = vpop.f32.mrf.mxu0
    %463 = vdwg.mxu0
    %vm464 = vcmask 64512
    %v465 = vsel %vm464, %v385, -inf
    %466 = vmax.xlane.f32.xlu0 %v465
    %v467 = vpop.xlane.xlu0 %466
    %v468 = vsel %vm464, %v461, -inf
    %469 = vmax.xlane.f32.xlu0 %v468
    %v470 = vpop.xlane.xlu0 %469
    %v471 = vsub.f32 %v385, %v467
    %v472 = vsub.f32 %v461, %v470
    %v473 = vmul.f32 %v471, 1.442695
    %v474 = vpow.pop %v473
    %v475 = vmul.f32 %v472, 1.442695
    %v476 = vpow.pop %v475
    %v477 = vsel %vm464, %v474, 0.0
    %478 = vadd.xlane.f32.xlu0 %v477
    %v479 = vpop.xlane.xlu0 %478
    %v480 = vsel %vm464, %v476, 0.0
    %481 = vadd.xlane.f32.xlu0 %v480
    %v482 = vpop.xlane.xlu0 %481
    %v483 = vrcp.pop %v479
    %v484 = vmul.f32 %v474, %v483
    %v485 = vrcp.pop %v482
    %v486 = vmul.f32 %v476, %v485
    %v488 = vsel %vm464, %v484, 0
    %490 = vmatprep.subr.mxu0 0.0
    %491 = vmatpush1.msra.mxu0 0.0
    %492 = vmatprep.subr.mxu0 0.0
    %493 = vmatpush1.msra.mxu0 0.0
    %494 = vmatprep.subr.mxu0 0.0
    %495 = vmatpush1.msra.mxu0 0.0
    %496 = vmatprep.subr.mxu0 0.0
    %497 = vmatpush1.msra.mxu0 0.0
    %498 = vmatprep.subr.mxu0 0.0
    %499 = vmatpush1.msra.mxu0 0.0
    %500 = vmatprep.subr.mxu0 0.0
    %501 = vmatpush1.msra.mxu0 0.0
    %502 = vmatprep.subr.mxu0 0.0
    %503 = vmatpush1.msra.mxu0 0.0
    %504 = vmatprep.subr.mxu0 0.0
    %505 = vmatpush1.msra.mxu0 0.0
    %506 = vmatprep.subr.mxu0 0.0
    %507 = vmatpush1.msra.mxu0 0.0
    %508 = vmatprep.subr.mxu0 0.0
    %509 = vmatpush1.msra.mxu0 0.0
    %510 = vmatprep.subr.mxu0 0.0
    %511 = vmatpush1.msra.mxu0 0.0
    %512 = vmatprep.subr.mxu0 0.0
    %513 = vmatpush1.msra.mxu0 0.0
    %514 = vmatprep.subr.mxu0 0.0
    %515 = vmatpush1.msra.mxu0 0.0
    %516 = vmatprep.subr.mxu0 0.0
    %517 = vmatpush1.msra.mxu0 0.0
    %518 = vmatprep.subr.mxu0 0.0
    %519 = vmatpush1.msra.mxu0 0.0
    %520 = vmatprep.subr.mxu0 0.0
    %521 = vmatpush1.msra.mxu0 %v303
    %522 = vmatprep.subr.mxu0 0.0
    %523 = vmatpush2.msra.mxu0 0.0
    %524 = vmatprep.subr.mxu0 0.0
    %525 = vmatpush2.msra.mxu0 0.0
    %526 = vmatprep.subr.mxu0 0.0
    %527 = vmatpush2.msra.mxu0 0.0
    %528 = vmatprep.subr.mxu0 0.0
    %529 = vmatpush2.msra.mxu0 0.0
    %530 = vmatprep.subr.mxu0 0.0
    %531 = vmatpush2.msra.mxu0 0.0
    %532 = vmatprep.subr.mxu0 0.0
    %533 = vmatpush2.msra.mxu0 0.0
    %534 = vmatprep.subr.mxu0 0.0
    %535 = vmatpush2.msra.mxu0 0.0
    %536 = vmatprep.subr.mxu0 0.0
    %537 = vmatpush2.msra.mxu0 0.0
    %538 = vmatprep.subr.mxu0 0.0
    %539 = vmatpush2.msra.mxu0 0.0
    %540 = vmatprep.subr.mxu0 0.0
    %541 = vmatpush2.msra.mxu0 0.0
    %542 = vmatprep.subr.mxu0 0.0
    %543 = vmatpush2.msra.mxu0 0.0
    %544 = vmatprep.subr.mxu0 0.0
    %545 = vmatpush2.msra.mxu0 0.0
    %546 = vmatprep.subr.mxu0 0.0
    %547 = vmatpush2.msra.mxu0 0.0
    %548 = vmatprep.subr.mxu0 0.0
    %549 = vmatpush2.msra.mxu0 0.0
    %550 = vmatprep.subr.mxu0 0.0
    %551 = vmatpush2.msra.mxu0 0.0
    %552 = vmatprep.subr.mxu0 0.0
    %553 = vmatpush2.msra.mxu0 0.0
    %554 = vmatprep.mubr.f32.mxu0 0.0
    %555 = vmatmul.mubr.f32.gmra.mxu0 %v488
    %v556 = vpop.f32.mrf.mxu0
    %v557 = vadd.f32 0.0, %v556
    %v558 = vpop.f32.mrf.mxu0
    %559 = vdwg.mxu0
    %v561 = vsel %vm464, %v486, 0
    %563 = vmatprep.subr.mxu0 0.0
    %564 = vmatpush1.msra.mxu0 0.0
    %565 = vmatprep.subr.mxu0 0.0
    %566 = vmatpush1.msra.mxu0 0.0
    %567 = vmatprep.subr.mxu0 0.0
    %568 = vmatpush1.msra.mxu0 0.0
    %569 = vmatprep.subr.mxu0 0.0
    %570 = vmatpush1.msra.mxu0 0.0
    %571 = vmatprep.subr.mxu0 0.0
    %572 = vmatpush1.msra.mxu0 0.0
    %573 = vmatprep.subr.mxu0 0.0
    %574 = vmatpush1.msra.mxu0 0.0
    %575 = vmatprep.subr.mxu0 0.0
    %576 = vmatpush1.msra.mxu0 0.0
    %577 = vmatprep.subr.mxu0 0.0
    %578 = vmatpush1.msra.mxu0 0.0
    %579 = vmatprep.subr.mxu0 0.0
    %580 = vmatpush1.msra.mxu0 0.0
    %581 = vmatprep.subr.mxu0 0.0
    %582 = vmatpush1.msra.mxu0 0.0
    %583 = vmatprep.subr.mxu0 0.0
    %584 = vmatpush1.msra.mxu0 0.0
    %585 = vmatprep.subr.mxu0 0.0
    %586 = vmatpush1.msra.mxu0 0.0
    %587 = vmatprep.subr.mxu0 0.0
    %588 = vmatpush1.msra.mxu0 0.0
    %589 = vmatprep.subr.mxu0 0.0
    %590 = vmatpush1.msra.mxu0 0.0
    %591 = vmatprep.subr.mxu0 0.0
    %592 = vmatpush1.msra.mxu0 0.0
    %593 = vmatprep.subr.mxu0 0.0
    %594 = vmatpush1.msra.mxu0 %v308
    %595 = vmatprep.subr.mxu0 0.0
    %596 = vmatpush2.msra.mxu0 0.0
    %597 = vmatprep.subr.mxu0 0.0
    %598 = vmatpush2.msra.mxu0 0.0
    %599 = vmatprep.subr.mxu0 0.0
    %600 = vmatpush2.msra.mxu0 0.0
    %601 = vmatprep.subr.mxu0 0.0
    %602 = vmatpush2.msra.mxu0 0.0
    %603 = vmatprep.subr.mxu0 0.0
    %604 = vmatpush2.msra.mxu0 0.0
    %605 = vmatprep.subr.mxu0 0.0
    %606 = vmatpush2.msra.mxu0 0.0
    %607 = vmatprep.subr.mxu0 0.0
    %608 = vmatpush2.msra.mxu0 0.0
    %609 = vmatprep.subr.mxu0 0.0
    %610 = vmatpush2.msra.mxu0 0.0
    %611 = vmatprep.subr.mxu0 0.0
    %612 = vmatpush2.msra.mxu0 0.0
    %613 = vmatprep.subr.mxu0 0.0
    %614 = vmatpush2.msra.mxu0 0.0
    %615 = vmatprep.subr.mxu0 0.0
    %616 = vmatpush2.msra.mxu0 0.0
    %617 = vmatprep.subr.mxu0 0.0
    %618 = vmatpush2.msra.mxu0 0.0
    %619 = vmatprep.subr.mxu0 0.0
    %620 = vmatpush2.msra.mxu0 0.0
    %621 = vmatprep.subr.mxu0 0.0
    %622 = vmatpush2.msra.mxu0 0.0
    %623 = vmatprep.subr.mxu0 0.0
    %624 = vmatpush2.msra.mxu0 0.0
    %625 = vmatprep.subr.mxu0 0.0
    %626 = vmatpush2.msra.mxu0 0.0
    %627 = vmatprep.mubr.f32.mxu0 0.0
    %628 = vmatmul.mubr.f32.gmra.mxu0 %v561
    %v629 = vpop.f32.mrf.mxu0
    %v630 = vadd.f32 0.0, %v629
    %v631 = vpop.f32.mrf.mxu0
    %632 = vdwg.mxu0
    %v633 = vld [vmem:[%s8] sm:$0xff]
    %v634 = vld [vmem:[%s8 + $0x8] sm:$0xff]
    %v635 = vld [vmem:[%s9] sm:$0x1]
    %v637 = vlaneseq
    %v638 = vshrl.u32 %v637, 7
    %v639 = vsub.s32 0, %v638
    %v640 = vrot.slane %v635, %v639
    %v643 = vsel %vm311, %v557, 0
    %v646 = vsel %vm311, %v630, 0
    %648 = vmatprep.subr.mxu0 0.0
    %649 = vmatpush1.msra.mxu0 0.0
    %650 = vmatprep.subr.mxu0 0.0
    %651 = vmatpush1.msra.mxu0 0.0
    %652 = vmatprep.subr.mxu0 0.0
    %653 = vmatpush1.msra.mxu0 0.0
    %654 = vmatprep.subr.mxu0 0.0
    %655 = vmatpush1.msra.mxu0 0.0
    %656 = vmatprep.subr.mxu0 0.0
    %657 = vmatpush1.msra.mxu0 0.0
    %658 = vmatprep.subr.mxu0 0.0
    %659 = vmatpush1.msra.mxu0 0.0
    %660 = vmatprep.subr.mxu0 0.0
    %661 = vmatpush1.msra.mxu0 0.0
    %662 = vmatprep.subr.mxu0 0.0
    %663 = vmatpush1.msra.mxu0 0.0
    %664 = vmatprep.subr.mxu0 0.0
    %665 = vmatpush1.msra.mxu0 0.0
    %666 = vmatprep.subr.mxu0 0.0
    %667 = vmatpush1.msra.mxu0 0.0
    %668 = vmatprep.subr.mxu0 0.0
    %669 = vmatpush1.msra.mxu0 0.0
    %670 = vmatprep.subr.mxu0 0.0
    %671 = vmatpush1.msra.mxu0 0.0
    %672 = vmatprep.subr.mxu0 0.0
    %673 = vmatpush1.msra.mxu0 0.0
    %674 = vmatprep.subr.mxu0 0.0
    %675 = vmatpush1.msra.mxu0 0.0
    %676 = vmatprep.subr.mxu0 0.0
    %677 = vmatpush1.msra.mxu0 %v634
    %678 = vmatprep.subr.mxu0 0.0
    %679 = vmatpush1.msra.mxu0 %v633
    %680 = vmatprep.subr.mxu0 0.0
    %681 = vmatpush2.msra.mxu0 0.0
    %682 = vmatprep.subr.mxu0 0.0
    %683 = vmatpush2.msra.mxu0 0.0
    %684 = vmatprep.subr.mxu0 0.0
    %685 = vmatpush2.msra.mxu0 0.0
    %686 = vmatprep.subr.mxu0 0.0
    %687 = vmatpush2.msra.mxu0 0.0
    %688 = vmatprep.subr.mxu0 0.0
    %689 = vmatpush2.msra.mxu0 0.0
    %690 = vmatprep.subr.mxu0 0.0
    %691 = vmatpush2.msra.mxu0 0.0
    %692 = vmatprep.subr.mxu0 0.0
    %693 = vmatpush2.msra.mxu0 0.0
    %694 = vmatprep.subr.mxu0 0.0
    %695 = vmatpush2.msra.mxu0 0.0
    %696 = vmatprep.subr.mxu0 0.0
    %697 = vmatpush2.msra.mxu0 0.0
    %698 = vmatprep.subr.mxu0 0.0
    %699 = vmatpush2.msra.mxu0 0.0
    %700 = vmatprep.subr.mxu0 0.0
    %701 = vmatpush2.msra.mxu0 0.0
    %702 = vmatprep.subr.mxu0 0.0
    %703 = vmatpush2.msra.mxu0 0.0
    %704 = vmatprep.subr.mxu0 0.0
    %705 = vmatpush2.msra.mxu0 0.0
    %706 = vmatprep.subr.mxu0 0.0
    %707 = vmatpush2.msra.mxu0 0.0
    %708 = vmatprep.subr.mxu0 0.0
    %709 = vmatpush2.msra.mxu0 0.0
    %710 = vmatprep.subr.mxu0 0.0
    %711 = vmatpush2.msra.mxu0 0.0
    %712 = vmatprep.mubr.f32.mxu0 0.0
    %713 = vmatmul.mubr.f32.gmra.mxu0 %v643
    %v714 = vpop.f32.mrf.mxu0
    %v715 = vadd.f32 %v640, %v714
    %v716 = vpop.f32.mrf.mxu0
    %717 = vmatprep.mubr.f32.mxu0 0.0
    %718 = vmatmul.mubr.f32.gmra.mxu0 %v646
    %v719 = vpop.f32.mrf.mxu0
    %v720 = vadd.f32 %v640, %v719
    %v721 = vpop.f32.mrf.mxu0
    %722 = vdwg.mxu0
    %723 = vst.msk [vmem:[#allocation2] sm:$0xff] %vm51, %v715
    %724 = vst.msk [vmem:[#allocation2 + $0x8] sm:$0xff] %vm51, %v720
    // Predicated region
    $region42: #{tpu_custom_call.1} parent=1 // pred_check
      _
    $region43: #{tpu_custom_call.1} parent=1 // pred_check_branch
      %726 = sbr.rel (0) target = $region45
    $region44: #{tpu_custom_call.1} parent=1 // pred_region
      %s728 = ssub.s32 256, 256
      %729 = vsyncadd [#allocation3], %s728
      %s730 = sshll.u32 [#allocation2], 4
      %s731 = int_to_ptr.vmem [resolvable:$true] %s730
      %736 = dma.vmem_to_hbm [thread:$0]  %s731, 256, %s10, [#allocation3], 128, 128, 8
    $region45: #{tpu_custom_call.1} parent=1 // pred_fallthru
      _
    // Predicated region
    $region46: #{tpu_custom_call.1} parent=1 // pred_check
      _
    $region47: #{tpu_custom_call.1} parent=1 // pred_check_branch
      %738 = sbr.rel (0) target = $region49
    $region48: #{tpu_custom_call.1} parent=1 // pred_region
      %739 = dma.done [#allocation3], 256
    $region49: #{tpu_custom_call.1} parent=1 // pred_fallthru
      _
    %740 = vsyncpa [#allocation3], 1

</llo_original>
